<compile_context>
chip_gen: v7x
topology: tpu7x:2x2x1
jax: 0.10.0
libtpu: 0.0.40
codegen_flags: <defaults>
</compile_context>

<pallas_src>
import functools

import jax
import jax.numpy as jnp
from jax.experimental import pallas as pl
from jax.experimental.pallas import tpu as pltpu


_MIN_BLOCKS = 8          # keep >= ~4 blocks per TensorCore (v7x has 2 TCs)
_SINGLE_BLOCK_MAX = 1024  # below this, launch overhead dominates; use one block


def _round_up(n, m):
    return ((n + m - 1) // m) * m


def gating_kernel(xT_ref, w_ref, b_ref, o_ref):
    # xT_ref: (2, TB)  features on sublanes, batch on lanes
    # w_ref : (E, 2)   PyTorch nn.Linear weight layout
    # b_ref : (E, 1)
    # o_ref : (E, TB)  softmax over experts (axis 0)
    x0 = xT_ref[0:1, :]                       # (1, TB)
    x1 = xT_ref[1:2, :]                       # (1, TB)
    w0 = w_ref[:, 0:1]                        # (E, 1)
    w1 = w_ref[:, 1:2]                        # (E, 1)
    # K=2 contraction as two VPU broadcast multiply-adds.
    logits = w0 * x0 + w1 * x1 + b_ref[...]   # (E, TB), f32
    # Numerically-stable softmax over the expert (sublane) axis; all per-lane,
    # so garbage in a ragged-tail lane never contaminates valid lanes.
    m = jnp.max(logits, axis=0, keepdims=True)         # (1, TB)
    e = jnp.exp(logits - m)                            # EUP
    denom = jnp.sum(e, axis=0, keepdims=True)          # (1, TB) sublane reduce
    o_ref[...] = (e * pl.reciprocal(denom, approx=True)).astype(o_ref.dtype)


def _pick_tile_and_vmem(E, out_dtype):
    """VMEM-budget-aware lane-tile cap and the scoped-VMEM limit to request."""
    try:
        vmem_cap = int(pltpu.get_tpu_info().vmem_capacity_bytes)
    except Exception:
        vmem_cap = 64 * 1024 * 1024            # conservative (v7x per-TC)
    # Request up to half of physical VMEM, never more than 64 MiB.
    vmem_limit = min(vmem_cap // 2, 64 * 1024 * 1024)
    budget = (vmem_limit * 3) // 4             # leave headroom for weights/slack
    out_itemsize = jnp.dtype(out_dtype).itemsize
    sub_pack_out = 8 if out_itemsize == 4 else 16
    sub_in = 8                                 # (2, TB) f32 pads to 8 sublanes
    sub_out = _round_up(max(E, 1), sub_pack_out)
    # double-buffered, sublane-padded VMEM bytes per lane of tile
    per_lane = 2 * (sub_in * 4 + sub_out * out_itemsize)
    tb_cap = max(128, (budget // per_lane) // 128 * 128)
    return tb_cap, vmem_limit


@functools.partial(
    jax.jit, static_argnames=("x_transposed", "expert_major", "out_dtype"))
def gating_network(x, weight, bias, *, x_transposed=False, expert_major=False,
                   out_dtype=jnp.float32):
    """softmax(x @ weight.T + bias, axis=experts).

    x      : (B, 2) f32, or (2, B) if x_transposed=True (skips layout plumbing).
    weight : (E, 2) f32 (PyTorch nn.Linear layout).
    bias   : (E,)   f32.
    Returns (B, E) probabilities (PyTorch semantics), or (E, B) kernel-native
    layout if expert_major=True.
    """
    xT = x if x_transposed else x.T            # (2, B): batch on lanes
    B = xT.shape[1]
    E = weight.shape[0]
    b2d = bias.reshape(E, 1)

    tb_cap, vmem_limit = _pick_tile_and_vmem(E, out_dtype)

    if B <= _SINGLE_BLOCK_MAX:
        TB = B                                 # block dims == full array dims
    else:
        # Largest VMEM-fitting tile, but keep >= _MIN_BLOCKS grid steps so both
        # v7x TensorCores get work and the pipeline can double-buffer.
        tb_for_blocks = _round_up(pl.cdiv(B, _MIN_BLOCKS), 128)
        TB = max(128, min(tb_cap, tb_for_blocks))
    grid = (pl.cdiv(B, TB),)                   # ragged tail handled by Pallas

    out_itemsize = jnp.dtype(out_dtype).itemsize
    cost = pl.CostEstimate(
        flops=int(8 * E * B),
        transcendentals=int(E * B),
        bytes_accessed=int((2 * 4 + E * out_itemsize) * B + (E * 2 + E) * 4),
    )

    outT = pl.pallas_call(
        gating_kernel,
        out_shape=jax.ShapeDtypeStruct((E, B), out_dtype),
        grid=grid,
        in_specs=[
            pl.BlockSpec((2, TB), lambda i: (0, i)),   # x tile (batch on lanes)
            pl.BlockSpec((E, 2), lambda i: (0, 0)),    # whole weight, resident
            pl.BlockSpec((E, 1), lambda i: (0, 0)),    # whole bias, resident
        ],
        out_specs=pl.BlockSpec((E, TB), lambda i: (0, i)),  # lane-dense stores
        compiler_params=pltpu.CompilerParams(
            dimension_semantics=("parallel",),         # pipelined; v7x 2-TC shard
            vmem_limit_bytes=int(vmem_limit),          # v5e default is only 16 MiB
        ),
        cost_estimate=cost,
    )(xT, weight, b2d)

    if expert_major:
        return outT                            # (E, B), no extra HBM round trip
    # PyTorch layout. Kept wrapper-side: with tiny E an in-kernel (TB, E) store
    # is masked-vst / VMEM-padding bound, costlier than this single transpose.
    return outT.T


if __name__ == "__main__":
    key = jax.random.PRNGKey(0)
    k_x, k_w, k_b, k_x2 = jax.random.split(key, 4)

    batch = 8
    num_experts = 4
    in_features = 2

    # Deterministic synthetic parameters (shapes from nn.Linear(2, num_experts)).
    bound = 1.0 / (in_features ** 0.5)
    weight = jax.random.uniform(k_w, (num_experts, in_features),
                                minval=-bound, maxval=bound, dtype=jnp.float32)
    bias = jax.random.uniform(k_b, (num_experts,),
                              minval=-bound, maxval=bound, dtype=jnp.float32)
    x = jax.random.normal(k_x, (batch, in_features), dtype=jnp.float32)

    out = gating_network(x, weight, bias)
    out = jax.block_until_ready(out)

    ref = jax.nn.softmax(x @ weight.T + bias, axis=1)
    assert out.shape == (batch, num_experts)
    assert jnp.allclose(out, ref, atol=2e-3, rtol=2e-3)

    # Multi-block path with a ragged tail (B not a multiple of the lane tile).
    big_batch = 2500
    x2 = jax.random.normal(k_x2, (big_batch, in_features), dtype=jnp.float32)
    out2 = jax.block_until_ready(gating_network(x2, weight, bias))
    ref2 = jax.nn.softmax(x2 @ weight.T + bias, axis=1)
    assert out2.shape == (big_batch, num_experts)
    assert jnp.allclose(out2, ref2, atol=2e-3, rtol=2e-3)

    # Expert-major / pre-transposed fast path (no wrapper layout plumbing).
    out3 = jax.block_until_ready(
        gating_network(x2.T, weight, bias, x_transposed=True, expert_major=True))
    assert out3.shape == (num_experts, big_batch)
    assert jnp.allclose(out3.T, ref2, atol=2e-3, rtol=2e-3)

    print("KERNEL_OK")
</pallas_src>

<mosaic_0001>
module attributes {stable_mosaic.version = 11 : i64} {
  func.func @gating_kernel(%arg0: i32, %arg1: memref<2x8xf32, #tpu.memory_space<vmem>>, %arg2: memref<4x2xf32, #tpu.memory_space<vmem>>, %arg3: memref<4x1xf32, #tpu.memory_space<vmem>>, %arg4: memref<4x8xf32, #tpu.memory_space<vmem>>) attributes {dimension_semantics = [#tpu.dimension_semantics<parallel>], iteration_bounds = array<i64: 1>, scalar_prefetch = 0 : i64, scratch_operands = 0 : i64, tpu.core_type = #tpu.core_type<tc>, window_params = [{transform_indices = @transform_0, window_bounds = array<i64: 2, 8>}, {pipeline_mode = #tpu.pipeline_mode<synchronous>, transform_indices = @transform_1, window_bounds = array<i64: 4, 2>}, {pipeline_mode = #tpu.pipeline_mode<synchronous>, transform_indices = @transform_2, window_bounds = array<i64: 4, 1>}, {transform_indices = @transform_3, window_bounds = array<i64: 4, 8>}]} {
    %c0 = arith.constant 0 : index
    %c0_0 = arith.constant 0 : index
    %0 = vector.load %arg1[%c0, %c0_0] : memref<2x8xf32, #tpu.memory_space<vmem>>, vector<1x8xf32>
    %c1 = arith.constant 1 : index
    %c0_1 = arith.constant 0 : index
    %1 = vector.load %arg1[%c1, %c0_1] : memref<2x8xf32, #tpu.memory_space<vmem>>, vector<1x8xf32>
    %c0_2 = arith.constant 0 : index
    %c0_3 = arith.constant 0 : index
    %2 = vector.load %arg2[%c0_2, %c0_3] : memref<4x2xf32, #tpu.memory_space<vmem>>, vector<4x1xf32>
    %c0_4 = arith.constant 0 : index
    %c1_5 = arith.constant 1 : index
    %3 = vector.load %arg2[%c0_4, %c1_5] : memref<4x2xf32, #tpu.memory_space<vmem>>, vector<4x1xf32>
    %4 = vector.broadcast %2 : vector<4x1xf32> to vector<4x8xf32>
    %5 = vector.broadcast %0 : vector<1x8xf32> to vector<4x8xf32>
    %6 = arith.mulf %4, %5 : vector<4x8xf32>
    %7 = vector.broadcast %3 : vector<4x1xf32> to vector<4x8xf32>
    %8 = vector.broadcast %1 : vector<1x8xf32> to vector<4x8xf32>
    %9 = arith.mulf %7, %8 : vector<4x8xf32>
    %10 = arith.addf %6, %9 : vector<4x8xf32>
    %c0_6 = arith.constant 0 : index
    %c0_7 = arith.constant 0 : index
    %11 = vector.load %arg3[%c0_6, %c0_7] : memref<4x1xf32, #tpu.memory_space<vmem>>, vector<4x1xf32>
    %12 = vector.broadcast %11 : vector<4x1xf32> to vector<4x8xf32>
    %13 = arith.addf %10, %12 : vector<4x8xf32>
    %cst = arith.constant dense<0xFF800000> : vector<8xf32>
    %14 = vector.multi_reduction <maximumf>, %13, %cst [0] : vector<4x8xf32> to vector<8xf32>
    %15 = vector.shape_cast %14 : vector<8xf32> to vector<1x8xf32>
    %16 = vector.broadcast %15 : vector<1x8xf32> to vector<4x8xf32>
    %17 = arith.subf %13, %16 : vector<4x8xf32>
    %18 = math.exp %17 : vector<4x8xf32>
    %cst_8 = arith.constant dense<0.000000e+00> : vector<8xf32>
    %19 = vector.multi_reduction <add>, %18, %cst_8 [0] : vector<4x8xf32> to vector<8xf32>
    %20 = vector.shape_cast %19 : vector<8xf32> to vector<1x8xf32>
    %21 = tpu.reciprocal %20 {approx = true} : vector<1x8xf32> -> vector<1x8xf32>
    %22 = vector.broadcast %21 : vector<1x8xf32> to vector<4x8xf32>
    %23 = arith.mulf %18, %22 : vector<4x8xf32>
    %c0_9 = arith.constant 0 : index
    %c0_10 = arith.constant 0 : index
    %24 = vector.load %arg4[%c0_9, %c0_10] : memref<4x8xf32, #tpu.memory_space<vmem>>, vector<4x8xf32>
    tpu.vector_store %arg4[%c0_9, %c0_10], %23 {strides = array<i32>} : memref<4x8xf32, #tpu.memory_space<vmem>>, vector<4x8xf32>,
    return
  }
  func.func @transform_0(%arg0: i32) -> (i32, i32) {
    %c0_i32 = arith.constant 0 : i32
    %c0_i32_0 = arith.constant 0 : i32
    return %c0_i32, %arg0 : i32, i32
  }
  func.func @transform_1(%arg0: i32) -> (i32, i32) {
    %c0_i32 = arith.constant 0 : i32
    %c0_i32_0 = arith.constant 0 : i32
    %c0_i32_1 = arith.constant 0 : i32
    return %c0_i32, %c0_i32_0 : i32, i32
  }
  func.func @transform_2(%arg0: i32) -> (i32, i32) {
    %c0_i32 = arith.constant 0 : i32
    %c0_i32_0 = arith.constant 0 : i32
    %c0_i32_1 = arith.constant 0 : i32
    return %c0_i32, %c0_i32_0 : i32, i32
  }
  func.func @transform_3(%arg0: i32) -> (i32, i32) {
    %c0_i32 = arith.constant 0 : i32
    %c0_i32_0 = arith.constant 0 : i32
    return %c0_i32, %arg0 : i32, i32
  }
}

</mosaic_0001>

<llo_original>
// kernel: gating_network.1
$region0: #{gating_network.1}
  #allocation0 [shape = 'u32[]', space=smem, size = 0x4, offset = 0x4, fixed_abs, tag = 'smem constant byte address 0x4 - core index']
  #allocation1 [shape = 'u32[144,128]{1,0:T(1,128)}', space=vmem, size = 0x12000, scoped, tag = 'internal scratch']
  %s0 = inlined_call_operand.vmem [shape: f32[2,8], index: 0, kind: input, shape index: {}]
  %s1 = inlined_call_operand.vmem [shape: f32[4,2], index: 1, kind: input, shape index: {}]
  %s2 = inlined_call_operand.vmem [shape: f32[4,1], index: 2, kind: input, shape index: {}]
  %s3 = inlined_call_operand.hbm [shape: f32[4,8], index: 3, kind: output, shape index: {}]
  %s4 = sld [smem:[#allocation0]]
  $region22: #{gating_network.1} parent=0
    _
  %s6 = ssub.s32 1, %s4
  %s7 = scalar_select 0, %s6, %s4
  $region1: #{gating_network.1} parent=0
    #allocation2 [shape = 'u8[2048]{0}', space=vmem, size = 0x800, scoped, tag = 'output window, operand 0, single buffered']
    #allocation3 [shape = 's32[1]{0}', space=sflag, size = 0x4, scoped, tag = 'scoped memory for gating_network.1']
    %8 = vsyncpa [#allocation3], 0
    // Predicated region
    $region2: #{gating_network.1} parent=1 // pred_check
      _
    $region3: #{gating_network.1} parent=1 // pred_check_branch
      %10 = sbr.rel (0) target = $region5
    $region4: #{gating_network.1} parent=1 // pred_region
      _
    $region5: #{gating_network.1} parent=1 // pred_fallthru
      _
    // Predicated region
    $region6: #{gating_network.1} parent=1 // pred_check
      _
    $region7: #{gating_network.1} parent=1 // pred_check_branch
      %12 = sbr.rel (0) target = $region9
    $region8: #{gating_network.1} parent=1 // pred_region
      _
    $region9: #{gating_network.1} parent=1 // pred_fallthru
      _
    // Predicated region
    $region10: #{gating_network.1} parent=1 // pred_check
      _
    $region11: #{gating_network.1} parent=1 // pred_check_branch
      %14 = sbr.rel (0) target = $region13
    $region12: #{gating_network.1} parent=1 // pred_region
      _
    $region13: #{gating_network.1} parent=1 // pred_fallthru
      _
    %v15 = vld [vmem:[%s0] sm:$0x1]
    %v16 = vld [vmem:[%s0 + $0x1] sm:$0x1]
    %v17 = vld [vmem:[%s1] sm:$0xf]
    %19 = vset.pattern.permute.xlu0 0
    %20 = vperm.xlu0 %19, %v17
    %v21 = vpop.permute.xlu0 %20
    %v23 = vlaneseq
    %v24 = vshrl.u32 %v23, 7
    %v25 = vsub.s32 0, %v24
    %v26 = vrot.slane %v15, %v25
    %v27 = vmul.f32 %v21, %v26
    %28 = vset.pattern.permute.xlu0 1
    %29 = vperm.xlu0 %28, %v17
    %v30 = vpop.permute.xlu0 %29
    %v32 = vlaneseq
    %v33 = vshrl.u32 %v32, 7
    %v34 = vsub.s32 0, %v33
    %v35 = vrot.slane %v16, %v34
    %v36 = vmul.f32 %v30, %v35
    %v37 = vadd.f32 %v27, %v36
    %v38 = vld [vmem:[%s2] sm:$0xf]
    %40 = vset.pattern.permute.xlu0 0
    %41 = vperm.xlu0 %40, %v38
    %v42 = vpop.permute.xlu0 %41
    %v44 = vadd.f32 %v37, %v42
    %vm45 = vcmask 60416
    %v46 = vsel %vm45, %v44, -inf
    %v47 = vrot.slane %v46, 4
    %v48 = vmax.f32 %v46, %v47
    %v49 = vrot.slane %v48, 2
    %v50 = vmax.f32 %v48, %v49
    %v51 = vrot.slane %v50, 1
    %v52 = vmax.f32 %v50, %v51
    %v53 = vsub.f32 %v44, %v52
    %v54 = vmul.f32 %v53, 1.442695
    %v55 = vpow.pop %v54
    %v56 = vsel %vm45, %v55, 0.0
    %v57 = vrot.slane %v56, 4
    %v58 = vadd.f32 %v56, %v57
    %v59 = vrot.slane %v58, 2
    %v60 = vadd.f32 %v58, %v59
    %v61 = vrot.slane %v60, 1
    %v62 = vadd.f32 %v60, %v61
    %v63 = vrcp.pop %v62
    %v64 = vmul.f32 %v55, %v63
    %65 = vst.msk [vmem:[#allocation2] sm:$0xf] %vm45, %v64
    // Predicated region
    $region14: #{gating_network.1} parent=1 // pred_check
      _
    $region15: #{gating_network.1} parent=1 // pred_check_branch
      %67 = sbr.rel (0) target = $region17
    $region16: #{gating_network.1} parent=1 // pred_region
      %s69 = ssub.s32 64, 64
      %70 = vsyncadd [#allocation3], %s69
      %s72 = sshll.u32 [#allocation2], 4
      %s73 = int_to_ptr.vmem [resolvable:$true] %s72
      %75 = dma.vmem_to_hbm [thread:$0]  %s73, 64, %s3, [#allocation3]
    $region17: #{gating_network.1} parent=1 // pred_fallthru
      _
    // Predicated region
    $region18: #{gating_network.1} parent=1 // pred_check
      _
    $region19: #{gating_network.1} parent=1 // pred_check_branch
      %77 = sbr.rel (0) target = $region21
    $region20: #{gating_network.1} parent=1 // pred_region
      %78 = dma.done [#allocation3], 64
    $region21: #{gating_network.1} parent=1 // pred_fallthru
      _
    %79 = vsyncpa [#allocation3], 1

</llo_original>
